<compile_context>
chip_gen: v6e
topology: v6e:2x2x1
jax: 0.10.0
libtpu: 0.0.40
codegen_flags: <defaults>
</compile_context>

<pallas_src>
import math

import jax
import jax.numpy as jnp
from jax.experimental import pallas as pl
from jax.experimental.pallas import tpu as pltpu

_HIGHEST = jax.lax.Precision.HIGHEST


# ----------------------------------------------------------------------------
# Pallas kernel: fused conv-autoencoder forward (one bf16 MXU matmul per layer).
# ----------------------------------------------------------------------------
def _conv_ae_kernel(x_ref, w1e_ref, w2e_ref, w2d_ref, w1d_ref, y_ref):
    _, T, F_in = x_ref.shape
    Tp = ((T + 1 + 7) // 8) * 8            # padded time length (>= T+1, sublane aligned)
    f32, bf16 = jnp.float32, jnp.bfloat16

    t_idx = jax.lax.broadcasted_iota(jnp.int32, (Tp, 128), 0)
    lane_lo = jax.lax.broadcasted_iota(jnp.int32, (Tp, 128), 1) < 64
    not_last = t_idx < Tp - 1
    not_first = t_idx > 0

    def shift_next(v):       # out[t] = v[t+1], 0 at t = Tp-1   (XLU roll + VPU mask)
        return jnp.where(not_last, pltpu.roll(v, Tp - 1, axis=0), 0.0)

    def shift_prev(v):       # out[t] = v[t-1], 0 at t = 0
        return jnp.where(not_first, pltpu.roll(v, 1, axis=0), 0.0)

    def pack(v_dup, v_shifted):
        # v_dup holds identical values in lane halves [0:64) and [64:128); keep the lower
        # half and replace the upper half with the time-shifted copy, so one matmul against
        # a tap-packed weight tile evaluates both k=2 taps at once.
        return jnp.where(lane_lo, v_dup, v_shifted).astype(bf16)

    def mm(p, w_ref):        # single-pass bf16 MXU matmul, f32 accumulate
        return jnp.dot(p, w_ref[...], preferred_element_type=f32)

    # ---- stage input: (T, F_in) -> (Tp, 128) with x duplicated in both lane halves
    x = x_ref[0]                                                         # (T, F_in) f32
    xt = jnp.concatenate([x, jnp.zeros((Tp - T, F_in), f32)], axis=0)    # (Tp, F_in)
    half = jnp.concatenate([xt, jnp.zeros((Tp, 64 - F_in), f32)], axis=1)
    x_dup = jnp.concatenate([half, half], axis=1)                        # (Tp, 128)
    p0 = pack(x_dup, shift_next(x_dup))

    # ---- encoder conv1d #1 ('same': k=2 pads one zero on the right) + tanh
    a1 = jnp.tanh(mm(p0, w1e_ref))           # a1 duplicated across lane halves
    p1 = pack(a1, shift_next(a1))

    # ---- encoder conv1d #2 -> latent + tanh
    lat = jnp.tanh(mm(p1, w2e_ref))
    # get_mask: zero time steps whose latent feature-sum is exactly 0 (zero input rows
    # propagate exact zeros through the bf16 matmuls, so the == 0 test stays exact).
    keep = (jnp.sum(lat, axis=1, keepdims=True) != 0.0).astype(f32)
    latm = lat * keep
    p2 = pack(latm, shift_prev(latm))

    # ---- decoder conv_transpose1d(w2): d[t] = lat[t]@w2[:,:,0] + lat[t-1]@w2[:,:,1],
    #      t in [0, T]; tanh; AvgPool1d(k=2, s=1) back to T valid steps.
    th3 = jnp.tanh(mm(p2, w2d_ref))                     # tanh(d[t]) for t in [0, T]
    e2 = 0.5 * (th3 + shift_next(th3))
    e2 = jnp.where(t_idx < T, e2, 0.0)                  # steps >= T must stay exactly 0
    p3 = pack(e2, shift_prev(e2))

    # ---- decoder conv_transpose1d(w1) + tanh + AvgPool1d(k=2, s=1)
    th4 = jnp.tanh(mm(p3, w1d_ref))
    out = 0.5 * (th4 + shift_next(th4))

    y_ref[0] = out[:T, :F_in].astype(y_ref.dtype)


# ----------------------------------------------------------------------------
# Weight packing (done ONCE, outside the per-call forward path).
# ----------------------------------------------------------------------------
def pack_conv_ae_weights(w1, w2, dtype=jnp.bfloat16):
    """Pack the k=2 conv taps into four (128,128) MXU tiles.

    w1: (H, F_in, 2)  -- encoder conv1 / decoder conv_transpose #2 weight
    w2: (F_out, H, 2) -- encoder conv2 / decoder conv_transpose #1 weight

    Tap 0 occupies rows [0:C_in), tap 1 rows [64:64+C_in); output columns are duplicated
    into lane halves [0:C_out) and [64:64+C_out) so the next layer's packed activation
    can be built without lane moves.
    """
    H, F_in, _ = w1.shape
    F_out = w2.shape[0]
    assert max(F_in, H, F_out) <= 64, "channel counts must fit one lane half"

    def tile(placements):
        m = jnp.zeros((128, 128), jnp.float32)
        for r, c, blk in placements:
            blk = jnp.asarray(blk, jnp.float32)
            m = m.at[r:r + blk.shape[0], c:c + blk.shape[1]].set(blk)
        return m.astype(dtype)

    w1_0t, w1_1t = w1[:, :, 0].T, w1[:, :, 1].T        # (F_in, H)   encoder conv1 taps
    w2_0t, w2_1t = w2[:, :, 0].T, w2[:, :, 1].T        # (H, F_out)  encoder conv2 taps
    w2_0, w2_1 = w2[:, :, 0], w2[:, :, 1]              # (F_out, H)  decoder deconv #1 taps
    w1_0, w1_1 = w1[:, :, 0], w1[:, :, 1]              # (H, F_in)   decoder deconv #2 taps

    w1e = tile([(0, 0, w1_0t), (0, 64, w1_0t), (64, 0, w1_1t), (64, 64, w1_1t)])
    w2e = tile([(0, 0, w2_0t), (0, 64, w2_0t), (64, 0, w2_1t), (64, 64, w2_1t)])
    w2d = tile([(0, 0, w2_0), (0, 64, w2_0), (64, 0, w2_1), (64, 64, w2_1)])
    w1d = tile([(0, 0, w1_0), (64, 0, w1_1)])          # last layer: no duplication needed
    return w1e, w2e, w2d, w1d


# ----------------------------------------------------------------------------
# Forward wrapper: (B,T,F_in) in, (B,T,F_in) out; grid over the batch.
# ----------------------------------------------------------------------------
def conv_autoencoder_forward(x, packed_weights):
    """x: (B, T, F_in) float32; packed_weights: output of pack_conv_ae_weights."""
    B, T, F_in = x.shape
    w1e, w2e, w2d, w1d = packed_weights
    w_spec = pl.BlockSpec((128, 128), lambda b: (0, 0))     # resident across grid steps
    return pl.pallas_call(
        _conv_ae_kernel,
        out_shape=jax.ShapeDtypeStruct((B, T, F_in), jnp.float32),
        grid=(B,),
        in_specs=[pl.BlockSpec((1, T, F_in), lambda b: (b, 0, 0)),
                  w_spec, w_spec, w_spec, w_spec],
        out_specs=pl.BlockSpec((1, T, F_in), lambda b: (b, 0, 0)),
        compiler_params=pltpu.CompilerParams(dimension_semantics=("parallel",)),
    )(x.astype(jnp.float32), w1e, w2e, w2d, w1d)


# ----------------------------------------------------------------------------
# Pure-JAX reference (explicit pads/concats + f32 HIGHEST einsums).
# ----------------------------------------------------------------------------
def reference_forward(x, w1, w2):
    x = x.astype(jnp.float32)
    B = x.shape[0]

    def conv_same(a, w):
        # F.conv1d(..., padding='same') with k=2 pads one zero on the right (time axis).
        zero = jnp.zeros((B, 1, a.shape[2]), a.dtype)
        a_next = jnp.concatenate([a[:, 1:, :], zero], axis=1)
        return (jnp.einsum('btc,oc->bto', a, w[:, :, 0], precision=_HIGHEST)
                + jnp.einsum('btc,oc->bto', a_next, w[:, :, 1], precision=_HIGHEST))

    def deconv(a, w):
        # F.conv_transpose1d(stride=1, padding=0, dilation=1): length T -> T+1
        o0 = jnp.einsum('btc,co->bto', a, w[:, :, 0], precision=_HIGHEST)
        o1 = jnp.einsum('btc,co->bto', a, w[:, :, 1], precision=_HIGHEST)
        zero = jnp.zeros((B, 1, w.shape[1]), a.dtype)
        return (jnp.concatenate([o0, zero], axis=1)
                + jnp.concatenate([zero, o1], axis=1))

    def avgpool(a):   # AvgPool1d(kernel_size=2, stride=1, padding=0)
        return 0.5 * (a[:, :-1, :] + a[:, 1:, :])

    a1 = jnp.tanh(conv_same(x, w1))
    lat = jnp.tanh(conv_same(a1, w2))
    lat = lat * (jnp.sum(lat, axis=2, keepdims=True) != 0.0).astype(lat.dtype)
    e2 = avgpool(jnp.tanh(deconv(lat, w2)))
    out = avgpool(jnp.tanh(deconv(e2, w1)))
    return out


# ----------------------------------------------------------------------------
if __name__ == "__main__":
    # Shapes consistent with the module: features_in=8, features_out=4 -> H = ceil(8-2) = 6
    B, T = 4, 8
    features_in, features_out = 8, 4
    H = math.ceil(features_in - (features_in - features_out) * 0.5)

    key = jax.random.PRNGKey(0)
    kx, k1, k2 = jax.random.split(key, 3)

    # Input sequences (B, T, F_in); tail time steps of some sequences are all-zero so the
    # latent zero-sum mask path is exercised.
    x = jax.random.normal(kx, (B, T, features_in), jnp.float32)
    lengths = jnp.array([T, 5, T, 3], dtype=jnp.int32)
    valid = jnp.arange(T)[None, :, None] < lengths[:, None, None]
    x = jnp.where(valid, x, 0.0)

    # param_w1: (H, F_in, 2), param_w2: (F_out, H, 2); scaled to keep tanh unsaturated.
    w1 = jax.random.normal(k1, (H, features_in, 2), jnp.float32) / math.sqrt(2.0 * features_in)
    w2 = jax.random.normal(k2, (features_out, H, 2), jnp.float32) / math.sqrt(2.0 * H)

    packed = pack_conv_ae_weights(w1, w2)       # hoisted out of the per-call forward path
    fwd = jax.jit(conv_autoencoder_forward)
    y = jax.block_until_ready(fwd(x, packed))

    y_ref = jax.block_until_ready(reference_forward(x, w1, w2))
    assert y.shape == (B, T, features_in)
    max_diff = float(jnp.max(jnp.abs(y - y_ref)))
    # bf16 single-pass MXU matmuls vs an f32 HIGHEST reference -> looser tolerance.
    assert max_diff < 5e-2, f"mismatch vs reference: {max_diff}"

    print("KERNEL_OK")
</pallas_src>

<mosaic_0001>
module attributes {stable_mosaic.version = 11 : i64} {
  func.func @_conv_ae_kernel(%arg0: i32, %arg1: memref<1x8x8xf32, #tpu.memory_space<vmem>>, %arg2: memref<128x128xbf16, #tpu.memory_space<vmem>>, %arg3: memref<128x128xbf16, #tpu.memory_space<vmem>>, %arg4: memref<128x128xbf16, #tpu.memory_space<vmem>>, %arg5: memref<128x128xbf16, #tpu.memory_space<vmem>>, %arg6: memref<1x8x8xf32, #tpu.memory_space<vmem>>) attributes {dimension_semantics = [#tpu.dimension_semantics<parallel>], iteration_bounds = array<i64: 4>, scalar_prefetch = 0 : i64, scratch_operands = 0 : i64, tpu.core_type = #tpu.core_type<tc>, window_params = [{transform_indices = @transform_0, window_bounds = array<i64: 1, 8, 8>}, {pipeline_mode = #tpu.pipeline_mode<synchronous>, transform_indices = @transform_1, window_bounds = array<i64: 128, 128>}, {pipeline_mode = #tpu.pipeline_mode<synchronous>, transform_indices = @transform_2, window_bounds = array<i64: 128, 128>}, {pipeline_mode = #tpu.pipeline_mode<synchronous>, transform_indices = @transform_3, window_bounds = array<i64: 128, 128>}, {pipeline_mode = #tpu.pipeline_mode<synchronous>, transform_indices = @transform_4, window_bounds = array<i64: 128, 128>}, {transform_indices = @transform_5, window_bounds = array<i64: 1, 8, 8>}]} {
    %0 = tpu.iota {dimensions = array<i32: 0>} : vector<16x128xi32>
    %1 = tpu.iota {dimensions = array<i32: 1>} : vector<16x128xi32>
    %c64_i32 = arith.constant 64 : i32
    %2 = vector.broadcast %c64_i32 : i32 to vector<16x128xi32>
    %3 = arith.cmpi slt, %1, %2 : vector<16x128xi32>
    %c15_i32 = arith.constant 15 : i32
    %4 = vector.broadcast %c15_i32 : i32 to vector<16x128xi32>
    %5 = arith.cmpi slt, %0, %4 : vector<16x128xi32>
    %c0_i32 = arith.constant 0 : i32
    %6 = vector.broadcast %c0_i32 : i32 to vector<16x128xi32>
    %7 = arith.cmpi sgt, %0, %6 : vector<16x128xi32>
    %c0 = arith.constant 0 : index
    %c0_0 = arith.constant 0 : index
    %c0_1 = arith.constant 0 : index
    %8 = vector.load %arg1[%c0, %c0_0, %c0_1] : memref<1x8x8xf32, #tpu.memory_space<vmem>>, vector<1x8x8xf32>
    %9 = vector.shape_cast %8 : vector<1x8x8xf32> to vector<8x8xf32>
    %cst = arith.constant 0.000000e+00 : f32
    %10 = vector.broadcast %cst : f32 to vector<8x8xf32>
    %11 = tpu.concatenate %9, %10 in 0 : vector<8x8xf32>, vector<8x8xf32> -> vector<16x8xf32>
    %cst_2 = arith.constant 0.000000e+00 : f32
    %12 = vector.broadcast %cst_2 : f32 to vector<16x56xf32>
    %13 = tpu.concatenate %11, %12 in 1 : vector<16x8xf32>, vector<16x56xf32> -> vector<16x64xf32>
    %14 = tpu.concatenate %13, %13 in 1 : vector<16x64xf32>, vector<16x64xf32> -> vector<16x128xf32>
    %c15_i32_3 = arith.constant 15 : i32
    %15 = tpu.dynamic_rotate %14 by %c15_i32_3 dim 0 : vector<16x128xf32>, i32 -> vector<16x128xf32>
    %cst_4 = arith.constant 0.000000e+00 : f32
    %16 = vector.broadcast %cst_4 : f32 to vector<16x128xf32>
    %17 = arith.select %5, %15, %16 : vector<16x128xi1>, vector<16x128xf32>
    %18 = arith.select %3, %14, %17 : vector<16x128xi1>, vector<16x128xf32>
    %19 = arith.truncf %18 : vector<16x128xf32> to vector<16x128xbf16>
    %c0_5 = arith.constant 0 : index
    %c0_6 = arith.constant 0 : index
    %20 = vector.load %arg2[%c0_5, %c0_6] : memref<128x128xbf16, #tpu.memory_space<vmem>>, vector<128x128xbf16>
    %cst_7 = arith.constant dense<0.000000e+00> : vector<16x128xf32>
    %21 = tpu.matmul %19, %20, %cst_7 {dimension_numbers = #tpu.dot_dimension_numbers<[1], [0], [0], [1], [0, 0, 1, 1], [], []>} : vector<16x128xbf16>, vector<128x128xbf16>, vector<16x128xf32> -> vector<16x128xf32>
    %22 = math.tanh %21 : vector<16x128xf32>
    %c15_i32_8 = arith.constant 15 : i32
    %23 = tpu.dynamic_rotate %22 by %c15_i32_8 dim 0 : vector<16x128xf32>, i32 -> vector<16x128xf32>
    %cst_9 = arith.constant 0.000000e+00 : f32
    %24 = vector.broadcast %cst_9 : f32 to vector<16x128xf32>
    %25 = arith.select %5, %23, %24 : vector<16x128xi1>, vector<16x128xf32>
    %26 = arith.select %3, %22, %25 : vector<16x128xi1>, vector<16x128xf32>
    %27 = arith.truncf %26 : vector<16x128xf32> to vector<16x128xbf16>
    %c0_10 = arith.constant 0 : index
    %c0_11 = arith.constant 0 : index
    %28 = vector.load %arg3[%c0_10, %c0_11] : memref<128x128xbf16, #tpu.memory_space<vmem>>, vector<128x128xbf16>
    %cst_12 = arith.constant dense<0.000000e+00> : vector<16x128xf32>
    %29 = tpu.matmul %27, %28, %cst_12 {dimension_numbers = #tpu.dot_dimension_numbers<[1], [0], [0], [1], [0, 0, 1, 1], [], []>} : vector<16x128xbf16>, vector<128x128xbf16>, vector<16x128xf32> -> vector<16x128xf32>
    %30 = math.tanh %29 : vector<16x128xf32>
    %cst_13 = arith.constant dense<0.000000e+00> : vector<16xf32>
    %31 = vector.multi_reduction <add>, %30, %cst_13 [1] : vector<16x128xf32> to vector<16xf32>
    %32 = vector.shape_cast %31 : vector<16xf32> to vector<16x1xf32>
    %cst_14 = arith.constant 0.000000e+00 : f32
    %33 = vector.broadcast %cst_14 : f32 to vector<16x1xf32>
    %34 = arith.cmpf one, %32, %33 : vector<16x1xf32>
    %35 = arith.extui %34 : vector<16x1xi1> to vector<16x1xi32>
    %36 = arith.sitofp %35 : vector<16x1xi32> to vector<16x1xf32>
    %37 = vector.broadcast %36 : vector<16x1xf32> to vector<16x128xf32>
    %38 = arith.mulf %30, %37 : vector<16x128xf32>
    %c1_i32 = arith.constant 1 : i32
    %39 = tpu.dynamic_rotate %38 by %c1_i32 dim 0 : vector<16x128xf32>, i32 -> vector<16x128xf32>
    %cst_15 = arith.constant 0.000000e+00 : f32
    %40 = vector.broadcast %cst_15 : f32 to vector<16x128xf32>
    %41 = arith.select %7, %39, %40 : vector<16x128xi1>, vector<16x128xf32>
    %42 = arith.select %3, %38, %41 : vector<16x128xi1>, vector<16x128xf32>
    %43 = arith.truncf %42 : vector<16x128xf32> to vector<16x128xbf16>
    %c0_16 = arith.constant 0 : index
    %c0_17 = arith.constant 0 : index
    %44 = vector.load %arg4[%c0_16, %c0_17] : memref<128x128xbf16, #tpu.memory_space<vmem>>, vector<128x128xbf16>
    %cst_18 = arith.constant dense<0.000000e+00> : vector<16x128xf32>
    %45 = tpu.matmul %43, %44, %cst_18 {dimension_numbers = #tpu.dot_dimension_numbers<[1], [0], [0], [1], [0, 0, 1, 1], [], []>} : vector<16x128xbf16>, vector<128x128xbf16>, vector<16x128xf32> -> vector<16x128xf32>
    %46 = math.tanh %45 : vector<16x128xf32>
    %c15_i32_19 = arith.constant 15 : i32
    %47 = tpu.dynamic_rotate %46 by %c15_i32_19 dim 0 : vector<16x128xf32>, i32 -> vector<16x128xf32>
    %cst_20 = arith.constant 0.000000e+00 : f32
    %48 = vector.broadcast %cst_20 : f32 to vector<16x128xf32>
    %49 = arith.select %5, %47, %48 : vector<16x128xi1>, vector<16x128xf32>
    %50 = arith.addf %46, %49 : vector<16x128xf32>
    %cst_21 = arith.constant 5.000000e-01 : f32
    %51 = vector.broadcast %cst_21 : f32 to vector<16x128xf32>
    %52 = arith.mulf %51, %50 : vector<16x128xf32>
    %c8_i32 = arith.constant 8 : i32
    %53 = vector.broadcast %c8_i32 : i32 to vector<16x128xi32>
    %54 = arith.cmpi slt, %0, %53 : vector<16x128xi32>
    %cst_22 = arith.constant 0.000000e+00 : f32
    %55 = vector.broadcast %cst_22 : f32 to vector<16x128xf32>
    %56 = arith.select %54, %52, %55 : vector<16x128xi1>, vector<16x128xf32>
    %c1_i32_23 = arith.constant 1 : i32
    %57 = tpu.dynamic_rotate %56 by %c1_i32_23 dim 0 : vector<16x128xf32>, i32 -> vector<16x128xf32>
    %cst_24 = arith.constant 0.000000e+00 : f32
    %58 = vector.broadcast %cst_24 : f32 to vector<16x128xf32>
    %59 = arith.select %7, %57, %58 : vector<16x128xi1>, vector<16x128xf32>
    %60 = arith.select %3, %56, %59 : vector<16x128xi1>, vector<16x128xf32>
    %61 = arith.truncf %60 : vector<16x128xf32> to vector<16x128xbf16>
    %c0_25 = arith.constant 0 : index
    %c0_26 = arith.constant 0 : index
    %62 = vector.load %arg5[%c0_25, %c0_26] : memref<128x128xbf16, #tpu.memory_space<vmem>>, vector<128x128xbf16>
    %cst_27 = arith.constant dense<0.000000e+00> : vector<16x128xf32>
    %63 = tpu.matmul %61, %62, %cst_27 {dimension_numbers = #tpu.dot_dimension_numbers<[1], [0], [0], [1], [0, 0, 1, 1], [], []>} : vector<16x128xbf16>, vector<128x128xbf16>, vector<16x128xf32> -> vector<16x128xf32>
    %64 = math.tanh %63 : vector<16x128xf32>
    %c15_i32_28 = arith.constant 15 : i32
    %65 = tpu.dynamic_rotate %64 by %c15_i32_28 dim 0 : vector<16x128xf32>, i32 -> vector<16x128xf32>
    %cst_29 = arith.constant 0.000000e+00 : f32
    %66 = vector.broadcast %cst_29 : f32 to vector<16x128xf32>
    %67 = arith.select %5, %65, %66 : vector<16x128xi1>, vector<16x128xf32>
    %68 = arith.addf %64, %67 : vector<16x128xf32>
    %cst_30 = arith.constant 5.000000e-01 : f32
    %69 = vector.broadcast %cst_30 : f32 to vector<16x128xf32>
    %70 = arith.mulf %69, %68 : vector<16x128xf32>
    %71 = vector.extract_strided_slice %70 {offsets = [0, 0], sizes = [8, 8], strides = [1, 1]} : vector<16x128xf32> to vector<8x8xf32>
    %c0_31 = arith.constant 0 : index
    %c0_32 = arith.constant 0 : index
    %c0_33 = arith.constant 0 : index
    %72 = vector.load %arg6[%c0_31, %c0_32, %c0_33] : memref<1x8x8xf32, #tpu.memory_space<vmem>>, vector<1x8x8xf32>
    %73 = vector.shape_cast %72 : vector<1x8x8xf32> to vector<8x8xf32>
    %74 = vector.shape_cast %71 : vector<8x8xf32> to vector<1x8x8xf32>
    tpu.vector_store %arg6[%c0_31, %c0_32, %c0_33], %74 {strides = array<i32>} : memref<1x8x8xf32, #tpu.memory_space<vmem>>, vector<1x8x8xf32>,
    return
  }
  func.func @transform_0(%arg0: i32) -> (i32, i32, i32) {
    %c0_i32 = arith.constant 0 : i32
    %c0_i32_0 = arith.constant 0 : i32
    %c0_i32_1 = arith.constant 0 : i32
    return %arg0, %c0_i32, %c0_i32_0 : i32, i32, i32
  }
  func.func @transform_1(%arg0: i32) -> (i32, i32) {
    %c0_i32 = arith.constant 0 : i32
    %c0_i32_0 = arith.constant 0 : i32
    %c0_i32_1 = arith.constant 0 : i32
    return %c0_i32, %c0_i32_0 : i32, i32
  }
  func.func @transform_2(%arg0: i32) -> (i32, i32) {
    %c0_i32 = arith.constant 0 : i32
    %c0_i32_0 = arith.constant 0 : i32
    %c0_i32_1 = arith.constant 0 : i32
    return %c0_i32, %c0_i32_0 : i32, i32
  }
  func.func @transform_3(%arg0: i32) -> (i32, i32) {
    %c0_i32 = arith.constant 0 : i32
    %c0_i32_0 = arith.constant 0 : i32
    %c0_i32_1 = arith.constant 0 : i32
    return %c0_i32, %c0_i32_0 : i32, i32
  }
  func.func @transform_4(%arg0: i32) -> (i32, i32) {
    %c0_i32 = arith.constant 0 : i32
    %c0_i32_0 = arith.constant 0 : i32
    %c0_i32_1 = arith.constant 0 : i32
    return %c0_i32, %c0_i32_0 : i32, i32
  }
  func.func @transform_5(%arg0: i32) -> (i32, i32, i32) {
    %c0_i32 = arith.constant 0 : i32
    %c0_i32_0 = arith.constant 0 : i32
    %c0_i32_1 = arith.constant 0 : i32
    return %arg0, %c0_i32, %c0_i32_0 : i32, i32, i32
  }
}

</mosaic_0001>

<llo_original>
// kernel: conv_autoencoder_forward.1
$region0: #{conv_autoencoder_forward.1}
  #allocation0 [shape = 'u32[]', space=smem, size = 0x4, offset = 0x4, fixed_abs, tag = 'smem constant byte address 0x4 - core index']
  #allocation1 [shape = 'u32[144,128]{1,0:T(1,128)}', space=vmem, size = 0x12000, scoped, tag = 'internal scratch']
  %s0 = inlined_call_operand.hbm [shape: f32[4,8,8], index: 0, kind: input, shape index: {}]
  %s1 = inlined_call_operand.hbm [shape: bf16[128,128], index: 1, kind: input, shape index: {}]
  %s2 = inlined_call_operand.hbm [shape: bf16[128,128], index: 2, kind: input, shape index: {}]
  %s3 = inlined_call_operand.hbm [shape: bf16[128,128], index: 3, kind: input, shape index: {}]
  %s4 = inlined_call_operand.hbm [shape: bf16[128,128], index: 4, kind: input, shape index: {}]
  %s5 = inlined_call_operand.hbm [shape: f32[4,8,8], index: 5, kind: output, shape index: {}]
  %s6 = sld [smem:[#allocation0]]
  $region73: #{conv_autoencoder_forward.1} parent=0
    _
  %s8 = ssub.s32 1, %s6
  %s9 = scalar_select 0, %s8, %s6
  $region1: #{conv_autoencoder_forward.1} parent=0
    #allocation2 [shape = 'u8[8192]{0}', space=vmem, size = 0x2000, scoped, tag = 'input window, operand 0']
    #allocation3 [shape = 's32[2]{0}', space=sflag, size = 0x8, scoped, tag = 'scoped memory for conv_autoencoder_forward.1']
    #allocation4 [shape = 's32[2]{0}', space=sflag, size = 0x8, scoped, tag = 'scoped memory for conv_autoencoder_forward.1']
    #allocation5 [shape = 'u8[32768]{0}', space=vmem, size = 0x8000, scoped, tag = 'input window, operand 1, single buffered']
    #allocation6 [shape = 's32[1]{0}', space=sflag, size = 0x4, scoped, tag = 'scoped memory for conv_autoencoder_forward.1']
    #allocation7 [shape = 'u8[32768]{0}', space=vmem, size = 0x8000, scoped, tag = 'input window, operand 2, single buffered']
    #allocation8 [shape = 'u8[32768]{0}', space=vmem, size = 0x8000, scoped, tag = 'input window, operand 3, single buffered']
    #allocation9 [shape = 's32[1]{0}', space=sflag, size = 0x4, scoped, tag = 'scoped memory for conv_autoencoder_forward.1']
    #allocation10 [shape = 'u8[32768]{0}', space=vmem, size = 0x8000, scoped, tag = 'input window, operand 4, single buffered']
    #allocation11 [shape = 'u8[8192]{0}', space=vmem, size = 0x2000, scoped, tag = 'output window, operand 0']
    %10 = vsyncpa [#allocation3], 0
    %s11 = scalar_lea.sflag [#allocation3], 1
    %12 = vsyncpa %s11, 0
    %13 = vsyncpa [#allocation6], 0
    %14 = vsyncpa [#allocation9], 0
    %15 = vsyncpa [#allocation4], 0
    %s16 = scalar_lea.sflag [#allocation4], 1
    %17 = vsyncpa %s16, 0
    loop: start=0, step=1, limit=6
    $region2: #{conv_autoencoder_forward.1} parent=1 // loop_pre_header
      _
    $region3: #{conv_autoencoder_forward.1} parent=1 // loop_header
      %s19 = sphi 0, %s23
      %p20 = scmp.ge.s32.totalorder %s19, 6
      %s29 = sphi 0, %s31
      %s32 = sphi 0, %s29
      %s33 = sphi 0, %s32
      %s49 = sphi 0, %s33
      %s53 = sphi 0, %s53
      %s55 = sphi 0, %s53
      %s56 = sphi 0, %s55
      %s70 = sphi 0, %s56
      %s74 = sphi 0, %s74
      %s76 = sphi 0, %s74
      %s77 = sphi 0, %s76
      %s91 = sphi 0, %s77
      %s95 = sphi 0, %s95
      %s97 = sphi 0, %s95
      %s98 = sphi 0, %s97
      %s112 = sphi 0, %s98
      %s116 = sphi 0, %s116
      %s118 = sphi 0, %s116
      %s119 = sphi 0, %s118
      %s133 = sphi 0, %s119
      %s139 = sphi 0, %s141
      %s142 = sphi 0, %s139
      %s143 = sphi 0, %s142
      %s159 = sphi 0, %s143
    $region4: #{conv_autoencoder_forward.1} parent=1 // loop_header_branch
      %22 = sbr.rel (%p20) target = $region8
    $region5: #{conv_autoencoder_forward.1} parent=1 // loop_body
      %s24 = ssub.s32 %s19, 1
      %s25 = ssub.s32 %s19, 2
      %s26 = sadd.s32 %s19, 1
      %s27 = ssub.s32 %s19, %s26
      %p28 = scmp.eq.s32.totalorder %s27, 0
      %s30 = sadd.s32 %s29, 1
      %s31 = scalar_select %p28, %s29, %s30
      %p34 = pneg %p28
      %p35 = scmp.eq.s32.totalorder %s19, 3
      %p36 = por %p34, %p35
      %p37 = scmp.ne.s32.totalorder %s29, %s32
      %p38 = scmp.eq.s32.totalorder %s19, 0
      %p39 = por %p37, %p38
      %p40 = scmp.ne.s32.totalorder %s29, %s32
      %p41 = scmp.eq.s32.totalorder %s24, 3
      %p42 = por %p40, %p41
      %p43 = scmp.ne.s32.totalorder %s32, %s33
      %p44 = scmp.eq.s32.totalorder %s24, 0
      %p45 = por %p43, %p44
      %p46 = scmp.ne.s32.totalorder %s32, %s33
      %p47 = scmp.eq.s32.totalorder %s25, 3
      %p48 = por %p46, %p47
      %p50 = scmp.ne.s32.totalorder %s33, %s49
      %p51 = scmp.eq.s32.totalorder %s25, 0
      %p52 = por %p50, %p51
      %s54 = sadd.s32 %s53, 1
      %p57 = scmp.eq.s32.totalorder %s19, 3
      %p58 = scmp.ne.s32.totalorder %s53, %s55
      %p59 = scmp.eq.s32.totalorder %s19, 0
      %p60 = por %p58, %p59
      %p61 = scmp.ne.s32.totalorder %s53, %s55
      %p62 = scmp.eq.s32.totalorder %s24, 3
      %p63 = por %p61, %p62
      %p64 = scmp.ne.s32.totalorder %s55, %s56
      %p65 = scmp.eq.s32.totalorder %s24, 0
      %p66 = por %p64, %p65
      %p67 = scmp.ne.s32.totalorder %s55, %s56
      %p68 = scmp.eq.s32.totalorder %s25, 3
      %p69 = por %p67, %p68
      %p71 = scmp.ne.s32.totalorder %s56, %s70
      %p72 = scmp.eq.s32.totalorder %s25, 0
      %p73 = por %p71, %p72
      %s75 = sadd.s32 %s74, 1
      %p78 = scmp.eq.s32.totalorder %s19, 3
      %p79 = scmp.ne.s32.totalorder %s74, %s76
      %p80 = scmp.eq.s32.totalorder %s19, 0
      %p81 = por %p79, %p80
      %p82 = scmp.ne.s32.totalorder %s74, %s76
      %p83 = scmp.eq.s32.totalorder %s24, 3
      %p84 = por %p82, %p83
      %p85 = scmp.ne.s32.totalorder %s76, %s77
      %p86 = scmp.eq.s32.totalorder %s24, 0
      %p87 = por %p85, %p86
      %p88 = scmp.ne.s32.totalorder %s76, %s77
      %p89 = scmp.eq.s32.totalorder %s25, 3
      %p90 = por %p88, %p89
      %p92 = scmp.ne.s32.totalorder %s77, %s91
      %p93 = scmp.eq.s32.totalorder %s25, 0
      %p94 = por %p92, %p93
      %s96 = sadd.s32 %s95, 1
      %p99 = scmp.eq.s32.totalorder %s19, 3
      %p100 = scmp.ne.s32.totalorder %s95, %s97
      %p101 = scmp.eq.s32.totalorder %s19, 0
      %p102 = por %p100, %p101
      %p103 = scmp.ne.s32.totalorder %s95, %s97
      %p104 = scmp.eq.s32.totalorder %s24, 3
      %p105 = por %p103, %p104
      %p106 = scmp.ne.s32.totalorder %s97, %s98
      %p107 = scmp.eq.s32.totalorder %s24, 0
      %p108 = por %p106, %p107
      %p109 = scmp.ne.s32.totalorder %s97, %s98
      %p110 = scmp.eq.s32.totalorder %s25, 3
      %p111 = por %p109, %p110
      %p113 = scmp.ne.s32.totalorder %s98, %s112
      %p114 = scmp.eq.s32.totalorder %s25, 0
      %p115 = por %p113, %p114
      %s117 = sadd.s32 %s116, 1
      %p120 = scmp.eq.s32.totalorder %s19, 3
      %p121 = scmp.ne.s32.totalorder %s116, %s118
      %p122 = scmp.eq.s32.totalorder %s19, 0
      %p123 = por %p121, %p122
      %p124 = scmp.ne.s32.totalorder %s116, %s118
      %p125 = scmp.eq.s32.totalorder %s24, 3
      %p126 = por %p124, %p125
      %p127 = scmp.ne.s32.totalorder %s118, %s119
      %p128 = scmp.eq.s32.totalorder %s24, 0
      %p129 = por %p127, %p128
      %p130 = scmp.ne.s32.totalorder %s118, %s119
      %p131 = scmp.eq.s32.totalorder %s25, 3
      %p132 = por %p130, %p131
      %p134 = scmp.ne.s32.totalorder %s119, %s133
      %p135 = scmp.eq.s32.totalorder %s25, 0
      %p136 = por %p134, %p135
      %s137 = ssub.s32 %s19, %s26
      %p138 = scmp.eq.s32.totalorder %s137, 0
      %s140 = sadd.s32 %s139, 1
      %s141 = scalar_select %p138, %s139, %s140
      %p144 = pneg %p138
      %p145 = scmp.eq.s32.totalorder %s19, 3
      %p146 = por %p144, %p145
      %p147 = scmp.ne.s32.totalorder %s139, %s142
      %p148 = scmp.eq.s32.totalorder %s19, 0
      %p149 = por %p147, %p148
      %p150 = scmp.ne.s32.totalorder %s139, %s142
      %p151 = scmp.eq.s32.totalorder %s24, 3
      %p152 = por %p150, %p151
      %p153 = scmp.ne.s32.totalorder %s142, %s143
      %p154 = scmp.eq.s32.totalorder %s24, 0
      %p155 = por %p153, %p154
      %p156 = scmp.ne.s32.totalorder %s142, %s143
      %p157 = scmp.eq.s32.totalorder %s25, 3
      %p158 = por %p156, %p157
      %p160 = scmp.ne.s32.totalorder %s143, %s159
      %p161 = scmp.eq.s32.totalorder %s25, 0
      %p162 = por %p160, %p161
      %p163 = scmp.le.s32.totalorder 1, %s19
      %p164 = scmp.lt.s32.totalorder %s19, 5
      %p165 = pnand %p163, %p164
      %p166 = pneg %p165
      // Predicated region
      $region9: #{conv_autoencoder_forward.1} parent=5 // pred_check
        _
      $region10: #{conv_autoencoder_forward.1} parent=5 // pred_check_branch
        %168 = sbr.rel (%p165) target = $region12
      $region11: #{conv_autoencoder_forward.1} parent=5 // pred_region
        %s169 = ssub.s32 %s19, 1
        // Predicated region
        $region13: #{conv_autoencoder_forward.1} parent=11 // pred_check
          %p170 = pneg %p66
        $region14: #{conv_autoencoder_forward.1} parent=11 // pred_check_branch
          %172 = sbr.rel (%p170) target = $region16
        $region15: #{conv_autoencoder_forward.1} parent=11 // pred_region
          %s174 = ssub.s32 1024, 1024
          %175 = vsyncadd [#allocation6], %s174
          %s176 = sshll.u32 [#allocation5], 4
          %s177 = int_to_ptr.vmem [resolvable:$true] %s176
          %182 = dma.hbm_to_vmem [thread:$0]  %s1, 1024, %s177, [#allocation6], 64, 64, 4
        $region16: #{conv_autoencoder_forward.1} parent=11 // pred_fallthru
          _
        // Predicated region
        $region17: #{conv_autoencoder_forward.1} parent=11 // pred_check
          %p183 = pneg %p87
        $region18: #{conv_autoencoder_forward.1} parent=11 // pred_check_branch
          %185 = sbr.rel (%p183) target = $region20
        $region19: #{conv_autoencoder_forward.1} parent=11 // pred_region
          %s187 = ssub.s32 1024, 1024
          %188 = vsyncadd [#allocation6], %s187
          %s189 = sshll.u32 [#allocation7], 4
          %s190 = int_to_ptr.vmem [resolvable:$true] %s189
          %195 = dma.hbm_to_vmem [thread:$0]  %s2, 1024, %s190, [#allocation6], 64, 64, 4
        $region20: #{conv_autoencoder_forward.1} parent=11 // pred_fallthru
          _
        // Predicated region
        $region21: #{conv_autoencoder_forward.1} parent=11 // pred_check
          %p196 = pneg %p108
        $region22: #{conv_autoencoder_forward.1} parent=11 // pred_check_branch
          %198 = sbr.rel (%p196) target = $region24
        $region23: #{conv_autoencoder_forward.1} parent=11 // pred_region
          %s200 = ssub.s32 1024, 1024
          %201 = vsyncadd [#allocation9], %s200
          %s202 = sshll.u32 [#allocation8], 4
          %s203 = int_to_ptr.vmem [resolvable:$true] %s202
          %208 = dma.hbm_to_vmem [thread:$0]  %s3, 1024, %s203, [#allocation9], 64, 64, 4
        $region24: #{conv_autoencoder_forward.1} parent=11 // pred_fallthru
          _
        // Predicated region
        $region25: #{conv_autoencoder_forward.1} parent=11 // pred_check
          %p209 = pneg %p129
        $region26: #{conv_autoencoder_forward.1} parent=11 // pred_check_branch
          %211 = sbr.rel (%p209) target = $region28
        $region27: #{conv_autoencoder_forward.1} parent=11 // pred_region
          %s213 = ssub.s32 1024, 1024
          %214 = vsyncadd [#allocation9], %s213
          %s215 = sshll.u32 [#allocation10], 4
          %s216 = int_to_ptr.vmem [resolvable:$true] %s215
          %221 = dma.hbm_to_vmem [thread:$0]  %s4, 1024, %s216, [#allocation9], 64, 64, 4
        $region28: #{conv_autoencoder_forward.1} parent=11 // pred_fallthru
          _
      $region12: #{conv_autoencoder_forward.1} parent=5 // pred_fallthru
        _
      %p222 = scmp.lt.s32.totalorder %s19, 4
      // Predicated region
      $region29: #{conv_autoencoder_forward.1} parent=5 // pred_check
        %p223 = pneg %p222
      $region30: #{conv_autoencoder_forward.1} parent=5 // pred_check_branch
        %225 = sbr.rel (%p223) target = $region32
      $region31: #{conv_autoencoder_forward.1} parent=5 // pred_region
        // Predicated region
        $region33: #{conv_autoencoder_forward.1} parent=31 // pred_check
          %p226 = pneg %p39
        $region34: #{conv_autoencoder_forward.1} parent=31 // pred_check_branch
          %228 = sbr.rel (%p226) target = $region36
        $region35: #{conv_autoencoder_forward.1} parent=31 // pred_region
          %s229 = sand.u32 %s29, 1
          %s230 = scalar_lea.sflag [#allocation3], %s229
          %s231 = sand.u32 %s29, 1
          %s232 = smul.addr %s231, 8
          %s233 = scalar_lea.vmem [#allocation2], %s232
          %s235 = ssub.s32 128, 128
          %236 = vsyncadd %s230, %s235
          %s237 = smul.addr %s19, 128
          %s238 = scalar_lea.hbm %s0, %s237
          %s240 = sshll.u32 %s233, 4
          %s241 = int_to_ptr.vmem [resolvable:$true] %s240
          %243 = dma.hbm_to_vmem [thread:$0]  %s238, 128, %s241, %s230
        $region36: #{conv_autoencoder_forward.1} parent=31 // pred_fallthru
          _
      $region32: #{conv_autoencoder_forward.1} parent=5 // pred_fallthru
        _
      %p244 = scmp.le.s32.totalorder 1, %s19
      %p245 = scmp.lt.s32.totalorder %s19, 5
      %p246 = pnand %p244, %p245
      %p247 = pneg %p246
      // Predicated region
      $region37: #{conv_autoencoder_forward.1} parent=5 // pred_check
        _
      $region38: #{conv_autoencoder_forward.1} parent=5 // pred_check_branch
        %249 = sbr.rel (%p246) target = $region40
      $region39: #{conv_autoencoder_forward.1} parent=5 // pred_region
        %s250 = ssub.s32 %s19, 1
        %s251 = sand.u32 %s32, 1
        %s252 = scalar_lea.sflag [#allocation3], %s251
        %s253 = sand.u32 %s32, 1
        %s254 = smul.addr %s253, 8
        %s255 = scalar_lea.vmem [#allocation2], %s254
        // Predicated region
        $region41: #{conv_autoencoder_forward.1} parent=39 // pred_check
          %p256 = pneg %p45
        $region42: #{conv_autoencoder_forward.1} parent=39 // pred_check_branch
          %258 = sbr.rel (%p256) target = $region44
        $region43: #{conv_autoencoder_forward.1} parent=39 // pred_region
          %259 = dma.done %s252, 128
        $region44: #{conv_autoencoder_forward.1} parent=39 // pred_fallthru
          _
        // Predicated region
        $region45: #{conv_autoencoder_forward.1} parent=39 // pred_check
          %p260 = pneg %p66
        $region46: #{conv_autoencoder_forward.1} parent=39 // pred_check_branch
          %262 = sbr.rel (%p260) target = $region48
        $region47: #{conv_autoencoder_forward.1} parent=39 // pred_region
          %263 = dma.done [#allocation6], 1024
        $region48: #{conv_autoencoder_forward.1} parent=39 // pred_fallthru
          _
        // Predicated region
        $region49: #{conv_autoencoder_forward.1} parent=39 // pred_check
          %p264 = pneg %p87
        $region50: #{conv_autoencoder_forward.1} parent=39 // pred_check_branch
          %266 = sbr.rel (%p264) target = $region52
        $region51: #{conv_autoencoder_forward.1} parent=39 // pred_region
          %267 = dma.done [#allocation6], 1024
        $region52: #{conv_autoencoder_forward.1} parent=39 // pred_fallthru
          _
        // Predicated region
        $region53: #{conv_autoencoder_forward.1} parent=39 // pred_check
          %p268 = pneg %p108
        $region54: #{conv_autoencoder_forward.1} parent=39 // pred_check_branch
          %270 = sbr.rel (%p268) target = $region56
        $region55: #{conv_autoencoder_forward.1} parent=39 // pred_region
          %271 = dma.done [#allocation9], 1024
        $region56: #{conv_autoencoder_forward.1} parent=39 // pred_fallthru
          _
        // Predicated region
        $region57: #{conv_autoencoder_forward.1} parent=39 // pred_check
          %p272 = pneg %p129
        $region58: #{conv_autoencoder_forward.1} parent=39 // pred_check_branch
          %274 = sbr.rel (%p272) target = $region60
        $region59: #{conv_autoencoder_forward.1} parent=39 // pred_region
          %275 = dma.done [#allocation9], 1024
        $region60: #{conv_autoencoder_forward.1} parent=39 // pred_fallthru
          _
        %s276 = sand.u32 %s32, 1
        %s277 = scalar_lea.sflag [#allocation3], %s276
        %s278 = sand.u32 %s32, 1
        %s279 = smul.addr %s278, 8
        %s280 = scalar_lea.vmem [#allocation2], %s279
        %p281 = pneg %p45
        %p282 = pneg %p42
        %p283 = pneg %p66
        %p284 = pneg %p63
        %p285 = pneg %p87
        %p286 = pneg %p84
        %p287 = pneg %p108
        %p288 = pneg %p105
        %p289 = pneg %p129
        %p290 = pneg %p126
        %p291 = pneg %p155
        %p292 = pneg %p152
        %s293 = sand.u32 %s142, 1
        %s294 = scalar_lea.sflag [#allocation4], %s293
        %s295 = sand.u32 %s142, 1
        %s296 = smul.addr %s295, 8
        %s297 = scalar_lea.vmem [#allocation11], %s296
        %v299 = vlaneseq
        %v300 = vshrl.u32 %v299, 7
        %v301 = vadd.s32 %v300, 8
        %v302 = vlaneseq
        %v303 = vand.u32 %v302, 127
        %vm304 = vcmp.lt.s32.totalorder %v303, 64
        %vm305 = vcmp.lt.s32.totalorder %v300, 15
        %vm306 = vcmp.lt.s32.totalorder %v301, 15
        %vm307 = vcmp.gt.s32.totalorder %v300, 0
        %vm308 = vcmp.gt.s32.totalorder %v301, 0
        %v309 = vld [vmem:[%s255] sm:$0xff]
        %vm310 = vcmask 64512
        %v311 = vsel %vm310, %v309, 0.0
        %314 = vrot.lane.b32.xlu0 %v311, 64
        %v315 = vpop.permute.xlu0 %314
        %316 = vrot.lane.b32.xlu0 0.0, 64
        %v317 = vpop.permute.xlu0 %316
        %vm320 = vcmask 523264
        %v321 = vsel %vm320, %v311, %v315
        %v322 = vsel %vm320, 0.0, %v317
        %v323 = vrot.slane %v321, 1
        %v324 = vrot.slane %v322, 1
        %vm325 = vcmp.lt.s32.totalorder %v300, 7
        %v326 = vsel %vm325, %v323, %v324
        %v327 = vsel %vm325, %v324, %v323
        %v328 = vsel %vm305, %v326, 0.0
        %v329 = vsel %vm306, %v327, 0.0
        %v330 = vsel %vm304, %v321, %v328
        %v331 = vsel %vm304, %v322, %v329
        %v332 = vpack.c.bf16 %v331, %v330
        %v333 = vld [vmem:[#allocation5] sm:$0xf]
        %v334 = vld [vmem:[#allocation5 + $0x4] sm:$0xf]
        %v335 = vld [vmem:[#allocation5 + $0x8] sm:$0xf]
        %v336 = vld [vmem:[#allocation5 + $0xc] sm:$0xf]
        %v337 = vld [vmem:[#allocation5 + $0x10] sm:$0xf]
        %v338 = vld [vmem:[#allocation5 + $0x14] sm:$0xf]
        %v339 = vld [vmem:[#allocation5 + $0x18] sm:$0xf]
        %v340 = vld [vmem:[#allocation5 + $0x1c] sm:$0xf]
        %v341 = vld [vmem:[#allocation5 + $0x20] sm:$0xf]
        %v342 = vld [vmem:[#allocation5 + $0x24] sm:$0xf]
        %v343 = vld [vmem:[#allocation5 + $0x28] sm:$0xf]
        %v344 = vld [vmem:[#allocation5 + $0x2c] sm:$0xf]
        %v345 = vld [vmem:[#allocation5 + $0x30] sm:$0xf]
        %v346 = vld [vmem:[#allocation5 + $0x34] sm:$0xf]
        %v347 = vld [vmem:[#allocation5 + $0x38] sm:$0xf]
        %v348 = vld [vmem:[#allocation5 + $0x3c] sm:$0xf]
        %v365 = vunpack.c.l.b16 %v333
        %v366 = vunpack.c.l.b16 %v334
        %v367 = vunpack.c.l.b16 %v335
        %v368 = vunpack.c.l.b16 %v336
        %v369 = vunpack.c.l.b16 %v337
        %v370 = vunpack.c.l.b16 %v338
        %v371 = vunpack.c.l.b16 %v339
        %v372 = vunpack.c.l.b16 %v340
        %v373 = vunpack.c.l.b16 %v341
        %v374 = vunpack.c.l.b16 %v342
        %v375 = vunpack.c.l.b16 %v343
        %v376 = vunpack.c.l.b16 %v344
        %v377 = vunpack.c.l.b16 %v345
        %v378 = vunpack.c.l.b16 %v346
        %v379 = vunpack.c.l.b16 %v347
        %v380 = vunpack.c.l.b16 %v348
        %v381 = vpack.c.b16 %v366, %v365
        %v382 = vpack.c.b16 %v368, %v367
        %v383 = vpack.c.b16 %v370, %v369
        %v384 = vpack.c.b16 %v372, %v371
        %v385 = vpack.c.b16 %v374, %v373
        %v386 = vpack.c.b16 %v376, %v375
        %v387 = vpack.c.b16 %v378, %v377
        %v388 = vpack.c.b16 %v380, %v379
        %397 = vmatprep.subr.bf16.mxu0 0
        %398 = vmatpush1.bf16.msra.mxu0 %v388
        %399 = vmatprep.subr.bf16.mxu0 0
        %400 = vmatpush1.bf16.msra.mxu0 %v387
        %401 = vmatprep.subr.bf16.mxu0 0
        %402 = vmatpush1.bf16.msra.mxu0 %v386
        %403 = vmatprep.subr.bf16.mxu0 0
        %404 = vmatpush1.bf16.msra.mxu0 %v385
        %405 = vmatprep.subr.bf16.mxu0 0
        %406 = vmatpush1.bf16.msra.mxu0 %v384
        %407 = vmatprep.subr.bf16.mxu0 0
        %408 = vmatpush1.bf16.msra.mxu0 %v383
        %409 = vmatprep.subr.bf16.mxu0 0
        %410 = vmatpush1.bf16.msra.mxu0 %v382
        %411 = vmatprep.subr.bf16.mxu0 0
        %412 = vmatpush1.bf16.msra.mxu0 %v381
        %413 = vmatprep.subr.bf16.mxu0 0
        %414 = vmatpush2.bf16.msra.mxu0 0
        %415 = vmatprep.subr.bf16.mxu0 0
        %416 = vmatpush2.bf16.msra.mxu0 0
        %417 = vmatprep.subr.bf16.mxu0 0
        %418 = vmatpush2.bf16.msra.mxu0 0
        %419 = vmatprep.subr.bf16.mxu0 0
        %420 = vmatpush2.bf16.msra.mxu0 0
        %421 = vmatprep.subr.bf16.mxu0 0
        %422 = vmatpush2.bf16.msra.mxu0 0
        %423 = vmatprep.subr.bf16.mxu0 0
        %424 = vmatpush2.bf16.msra.mxu0 0
        %425 = vmatprep.subr.bf16.mxu0 0
        %426 = vmatpush2.bf16.msra.mxu0 0
        %427 = vmatprep.subr.bf16.mxu0 0
        %428 = vmatpush2.bf16.msra.mxu0 0
        %429 = vmatprep.mubr.bf16.mxu0 0
        %430 = vmatmul.mubr.bf16.gmra.mxu0 %v332
        %v431 = vpop.f32.mrf.mxu0
        %v432 = vadd.f32 0.0, %v431
        %v433 = vpop.f32.mrf.mxu0
        %v434 = vpop.f32.mrf.mxu0
        %v435 = vadd.f32 0.0, %v434
        %v436 = vpop.f32.mrf.mxu0
        %437 = vdwg.mxu0
        %v438 = vtanh.pop %v432
        %v439 = vtanh.pop %v435
        %v440 = vrot.slane %v438, 1
        %v441 = vrot.slane %v439, 1
        %v442 = vsel %vm325, %v440, %v441
        %v443 = vsel %vm325, %v441, %v440
        %v444 = vsel %vm305, %v442, 0.0
        %v445 = vsel %vm306, %v443, 0.0
        %v446 = vsel %vm304, %v438, %v444
        %v447 = vsel %vm304, %v439, %v445
        %v448 = vpack.c.bf16 %v447, %v446
        %v449 = vld [vmem:[#allocation7] sm:$0xf]
        %v450 = vld [vmem:[#allocation7 + $0x4] sm:$0xf]
        %v451 = vld [vmem:[#allocation7 + $0x8] sm:$0xf]
        %v452 = vld [vmem:[#allocation7 + $0xc] sm:$0xf]
        %v453 = vld [vmem:[#allocation7 + $0x10] sm:$0xf]
        %v454 = vld [vmem:[#allocation7 + $0x14] sm:$0xf]
        %v455 = vld [vmem:[#allocation7 + $0x18] sm:$0xf]
        %v456 = vld [vmem:[#allocation7 + $0x1c] sm:$0xf]
        %v457 = vld [vmem:[#allocation7 + $0x20] sm:$0xf]
        %v458 = vld [vmem:[#allocation7 + $0x24] sm:$0xf]
        %v459 = vld [vmem:[#allocation7 + $0x28] sm:$0xf]
        %v460 = vld [vmem:[#allocation7 + $0x2c] sm:$0xf]
        %v461 = vld [vmem:[#allocation7 + $0x30] sm:$0xf]
        %v462 = vld [vmem:[#allocation7 + $0x34] sm:$0xf]
        %v463 = vld [vmem:[#allocation7 + $0x38] sm:$0xf]
        %v464 = vld [vmem:[#allocation7 + $0x3c] sm:$0xf]
        %v481 = vunpack.c.l.b16 %v449
        %v482 = vunpack.c.l.b16 %v450
        %v483 = vunpack.c.l.b16 %v451
        %v484 = vunpack.c.l.b16 %v452
        %v485 = vunpack.c.l.b16 %v453
        %v486 = vunpack.c.l.b16 %v454
        %v487 = vunpack.c.l.b16 %v455
        %v488 = vunpack.c.l.b16 %v456
        %v489 = vunpack.c.l.b16 %v457
        %v490 = vunpack.c.l.b16 %v458
        %v491 = vunpack.c.l.b16 %v459
        %v492 = vunpack.c.l.b16 %v460
        %v493 = vunpack.c.l.b16 %v461
        %v494 = vunpack.c.l.b16 %v462
        %v495 = vunpack.c.l.b16 %v463
        %v496 = vunpack.c.l.b16 %v464
        %v497 = vpack.c.b16 %v482, %v481
        %v498 = vpack.c.b16 %v484, %v483
        %v499 = vpack.c.b16 %v486, %v485
        %v500 = vpack.c.b16 %v488, %v487
        %v501 = vpack.c.b16 %v490, %v489
        %v502 = vpack.c.b16 %v492, %v491
        %v503 = vpack.c.b16 %v494, %v493
        %v504 = vpack.c.b16 %v496, %v495
        %513 = vmatprep.subr.bf16.mxu0 0
        %514 = vmatpush1.bf16.msra.mxu0 %v504
        %515 = vmatprep.subr.bf16.mxu0 0
        %516 = vmatpush1.bf16.msra.mxu0 %v503
        %517 = vmatprep.subr.bf16.mxu0 0
        %518 = vmatpush1.bf16.msra.mxu0 %v502
        %519 = vmatprep.subr.bf16.mxu0 0
        %520 = vmatpush1.bf16.msra.mxu0 %v501
        %521 = vmatprep.subr.bf16.mxu0 0
        %522 = vmatpush1.bf16.msra.mxu0 %v500
        %523 = vmatprep.subr.bf16.mxu0 0
        %524 = vmatpush1.bf16.msra.mxu0 %v499
        %525 = vmatprep.subr.bf16.mxu0 0
        %526 = vmatpush1.bf16.msra.mxu0 %v498
        %527 = vmatprep.subr.bf16.mxu0 0
        %528 = vmatpush1.bf16.msra.mxu0 %v497
        %529 = vmatprep.subr.bf16.mxu0 0
        %530 = vmatpush2.bf16.msra.mxu0 0
        %531 = vmatprep.subr.bf16.mxu0 0
        %532 = vmatpush2.bf16.msra.mxu0 0
        %533 = vmatprep.subr.bf16.mxu0 0
        %534 = vmatpush2.bf16.msra.mxu0 0
        %535 = vmatprep.subr.bf16.mxu0 0
        %536 = vmatpush2.bf16.msra.mxu0 0
        %537 = vmatprep.subr.bf16.mxu0 0
        %538 = vmatpush2.bf16.msra.mxu0 0
        %539 = vmatprep.subr.bf16.mxu0 0
        %540 = vmatpush2.bf16.msra.mxu0 0
        %541 = vmatprep.subr.bf16.mxu0 0
        %542 = vmatpush2.bf16.msra.mxu0 0
        %543 = vmatprep.subr.bf16.mxu0 0
        %544 = vmatpush2.bf16.msra.mxu0 0
        %545 = vmatprep.mubr.bf16.mxu0 0
        %546 = vmatmul.mubr.bf16.gmra.mxu0 %v448
        %v547 = vpop.f32.mrf.mxu0
        %v548 = vadd.f32 0.0, %v547
        %v549 = vpop.f32.mrf.mxu0
        %v550 = vpop.f32.mrf.mxu0
        %v551 = vadd.f32 0.0, %v550
        %v552 = vpop.f32.mrf.mxu0
        %553 = vdwg.mxu0
        %v554 = vtanh.pop %v548
        %v555 = vtanh.pop %v551
        %556 = vadd.xlane.f32.xlu0 %v554
        %v557 = vpop.xlane.xlu0 %556
        %558 = vadd.xlane.f32.xlu0 %v555
        %v559 = vpop.xlane.xlu0 %558
        %vm560 = vcmp.ne.f32.partialorder %v557, 0.0
        %vm561 = vcmp.ne.f32.partialorder %v559, 0.0
        %v562 = vsel %vm560, 1, 0
        %v563 = vsel %vm561, 1, 0
        %v564 = vcvt.s32.f32 %v562
        %v565 = vcvt.s32.f32 %v563
        %v566 = vmul.f32 %v554, %v564
        %v567 = vmul.f32 %v555, %v565
        %v568 = vrot.slane %v566, 7
        %v569 = vrot.slane %v567, 7
        %vm570 = vcmp.lt.s32.totalorder %v300, 1
        %v571 = vsel %vm570, %v568, %v569
        %v572 = vsel %vm570, %v569, %v568
        %v573 = vsel %vm307, %v572, 0.0
        %v574 = vsel %vm308, %v571, 0.0
        %v575 = vsel %vm304, %v566, %v573
        %v576 = vsel %vm304, %v567, %v574
        %v577 = vpack.c.bf16 %v576, %v575
        %v578 = vld [vmem:[#allocation8] sm:$0xf]
        %v579 = vld [vmem:[#allocation8 + $0x4] sm:$0xf]
        %v580 = vld [vmem:[#allocation8 + $0x8] sm:$0xf]
        %v581 = vld [vmem:[#allocation8 + $0xc] sm:$0xf]
        %v582 = vld [vmem:[#allocation8 + $0x10] sm:$0xf]
        %v583 = vld [vmem:[#allocation8 + $0x14] sm:$0xf]
        %v584 = vld [vmem:[#allocation8 + $0x18] sm:$0xf]
        %v585 = vld [vmem:[#allocation8 + $0x1c] sm:$0xf]
        %v586 = vld [vmem:[#allocation8 + $0x20] sm:$0xf]
        %v587 = vld [vmem:[#allocation8 + $0x24] sm:$0xf]
        %v588 = vld [vmem:[#allocation8 + $0x28] sm:$0xf]
        %v589 = vld [vmem:[#allocation8 + $0x2c] sm:$0xf]
        %v590 = vld [vmem:[#allocation8 + $0x30] sm:$0xf]
        %v591 = vld [vmem:[#allocation8 + $0x34] sm:$0xf]
        %v592 = vld [vmem:[#allocation8 + $0x38] sm:$0xf]
        %v593 = vld [vmem:[#allocation8 + $0x3c] sm:$0xf]
        %v610 = vunpack.c.l.b16 %v578
        %v611 = vunpack.c.l.b16 %v579
        %v612 = vunpack.c.l.b16 %v580
        %v613 = vunpack.c.l.b16 %v581
        %v614 = vunpack.c.l.b16 %v582
        %v615 = vunpack.c.l.b16 %v583
        %v616 = vunpack.c.l.b16 %v584
        %v617 = vunpack.c.l.b16 %v585
        %v618 = vunpack.c.l.b16 %v586
        %v619 = vunpack.c.l.b16 %v587
        %v620 = vunpack.c.l.b16 %v588
        %v621 = vunpack.c.l.b16 %v589
        %v622 = vunpack.c.l.b16 %v590
        %v623 = vunpack.c.l.b16 %v591
        %v624 = vunpack.c.l.b16 %v592
        %v625 = vunpack.c.l.b16 %v593
        %v626 = vpack.c.b16 %v611, %v610
        %v627 = vpack.c.b16 %v613, %v612
        %v628 = vpack.c.b16 %v615, %v614
        %v629 = vpack.c.b16 %v617, %v616
        %v630 = vpack.c.b16 %v619, %v618
        %v631 = vpack.c.b16 %v621, %v620
        %v632 = vpack.c.b16 %v623, %v622
        %v633 = vpack.c.b16 %v625, %v624
        %642 = vmatprep.subr.bf16.mxu0 0
        %643 = vmatpush1.bf16.msra.mxu0 %v633
        %644 = vmatprep.subr.bf16.mxu0 0
        %645 = vmatpush1.bf16.msra.mxu0 %v632
        %646 = vmatprep.subr.bf16.mxu0 0
        %647 = vmatpush1.bf16.msra.mxu0 %v631
        %648 = vmatprep.subr.bf16.mxu0 0
        %649 = vmatpush1.bf16.msra.mxu0 %v630
        %650 = vmatprep.subr.bf16.mxu0 0
        %651 = vmatpush1.bf16.msra.mxu0 %v629
        %652 = vmatprep.subr.bf16.mxu0 0
        %653 = vmatpush1.bf16.msra.mxu0 %v628
        %654 = vmatprep.subr.bf16.mxu0 0
        %655 = vmatpush1.bf16.msra.mxu0 %v627
        %656 = vmatprep.subr.bf16.mxu0 0
        %657 = vmatpush1.bf16.msra.mxu0 %v626
        %658 = vmatprep.subr.bf16.mxu0 0
        %659 = vmatpush2.bf16.msra.mxu0 0
        %660 = vmatprep.subr.bf16.mxu0 0
        %661 = vmatpush2.bf16.msra.mxu0 0
        %662 = vmatprep.subr.bf16.mxu0 0
        %663 = vmatpush2.bf16.msra.mxu0 0
        %664 = vmatprep.subr.bf16.mxu0 0
        %665 = vmatpush2.bf16.msra.mxu0 0
        %666 = vmatprep.subr.bf16.mxu0 0
        %667 = vmatpush2.bf16.msra.mxu0 0
        %668 = vmatprep.subr.bf16.mxu0 0
        %669 = vmatpush2.bf16.msra.mxu0 0
        %670 = vmatprep.subr.bf16.mxu0 0
        %671 = vmatpush2.bf16.msra.mxu0 0
        %672 = vmatprep.subr.bf16.mxu0 0
        %673 = vmatpush2.bf16.msra.mxu0 0
        %674 = vmatprep.mubr.bf16.mxu0 0
        %675 = vmatmul.mubr.bf16.gmra.mxu0 %v577
        %v676 = vpop.f32.mrf.mxu0
        %v677 = vadd.f32 0.0, %v676
        %v678 = vpop.f32.mrf.mxu0
        %v679 = vpop.f32.mrf.mxu0
        %v680 = vadd.f32 0.0, %v679
        %v681 = vpop.f32.mrf.mxu0
        %682 = vdwg.mxu0
        %v683 = vtanh.pop %v677
        %v684 = vtanh.pop %v680
        %v685 = vrot.slane %v683, 1
        %v686 = vrot.slane %v684, 1
        %v687 = vsel %vm325, %v685, %v686
        %v688 = vsel %vm325, %v686, %v685
        %v689 = vsel %vm305, %v687, 0.0
        %v690 = vsel %vm306, %v688, 0.0
        %v691 = vadd.f32 %v683, %v689
        %v692 = vadd.f32 %v684, %v690
        %v693 = vmul.f32 %v691, 0.5
        %v694 = vmul.f32 %v692, 0.5
        %vm695 = vcmp.lt.s32.totalorder %v300, 8
        %vm696 = vcmp.lt.s32.totalorder %v301, 8
        %v697 = vsel %vm695, %v693, 0.0
        %v698 = vsel %vm696, %v694, 0.0
        %v699 = vrot.slane %v697, 7
        %v700 = vrot.slane %v698, 7
        %v701 = vsel %vm570, %v699, %v700
        %v702 = vsel %vm570, %v700, %v699
        %v703 = vsel %vm307, %v702, 0.0
        %v704 = vsel %vm308, %v701, 0.0
        %v705 = vsel %vm304, %v697, %v703
        %v706 = vsel %vm304, %v698, %v704
        %v707 = vpack.c.bf16 %v706, %v705
        %v708 = vld [vmem:[#allocation10] sm:$0xf]
        %v709 = vld [vmem:[#allocation10 + $0x4] sm:$0xf]
        %v710 = vld [vmem:[#allocation10 + $0x8] sm:$0xf]
        %v711 = vld [vmem:[#allocation10 + $0xc] sm:$0xf]
        %v712 = vld [vmem:[#allocation10 + $0x10] sm:$0xf]
        %v713 = vld [vmem:[#allocation10 + $0x14] sm:$0xf]
        %v714 = vld [vmem:[#allocation10 + $0x18] sm:$0xf]
        %v715 = vld [vmem:[#allocation10 + $0x1c] sm:$0xf]
        %v716 = vld [vmem:[#allocation10 + $0x20] sm:$0xf]
        %v717 = vld [vmem:[#allocation10 + $0x24] sm:$0xf]
        %v718 = vld [vmem:[#allocation10 + $0x28] sm:$0xf]
        %v719 = vld [vmem:[#allocation10 + $0x2c] sm:$0xf]
        %v720 = vld [vmem:[#allocation10 + $0x30] sm:$0xf]
        %v721 = vld [vmem:[#allocation10 + $0x34] sm:$0xf]
        %v722 = vld [vmem:[#allocation10 + $0x38] sm:$0xf]
        %v723 = vld [vmem:[#allocation10 + $0x3c] sm:$0xf]
        %v740 = vunpack.c.l.b16 %v708
        %v741 = vunpack.c.l.b16 %v709
        %v742 = vunpack.c.l.b16 %v710
        %v743 = vunpack.c.l.b16 %v711
        %v744 = vunpack.c.l.b16 %v712
        %v745 = vunpack.c.l.b16 %v713
        %v746 = vunpack.c.l.b16 %v714
        %v747 = vunpack.c.l.b16 %v715
        %v748 = vunpack.c.l.b16 %v716
        %v749 = vunpack.c.l.b16 %v717
        %v750 = vunpack.c.l.b16 %v718
        %v751 = vunpack.c.l.b16 %v719
        %v752 = vunpack.c.l.b16 %v720
        %v753 = vunpack.c.l.b16 %v721
        %v754 = vunpack.c.l.b16 %v722
        %v755 = vunpack.c.l.b16 %v723
        %v756 = vpack.c.b16 %v741, %v740
        %v757 = vpack.c.b16 %v743, %v742
        %v758 = vpack.c.b16 %v745, %v744
        %v759 = vpack.c.b16 %v747, %v746
        %v760 = vpack.c.b16 %v749, %v748
        %v761 = vpack.c.b16 %v751, %v750
        %v762 = vpack.c.b16 %v753, %v752
        %v763 = vpack.c.b16 %v755, %v754
        %772 = vmatprep.subr.bf16.mxu0 0
        %773 = vmatpush1.bf16.msra.mxu0 %v763
        %774 = vmatprep.subr.bf16.mxu0 0
        %775 = vmatpush1.bf16.msra.mxu0 %v762
        %776 = vmatprep.subr.bf16.mxu0 0
        %777 = vmatpush1.bf16.msra.mxu0 %v761
        %778 = vmatprep.subr.bf16.mxu0 0
        %779 = vmatpush1.bf16.msra.mxu0 %v760
        %780 = vmatprep.subr.bf16.mxu0 0
        %781 = vmatpush1.bf16.msra.mxu0 %v759
        %782 = vmatprep.subr.bf16.mxu0 0
        %783 = vmatpush1.bf16.msra.mxu0 %v758
        %784 = vmatprep.subr.bf16.mxu0 0
        %785 = vmatpush1.bf16.msra.mxu0 %v757
        %786 = vmatprep.subr.bf16.mxu0 0
        %787 = vmatpush1.bf16.msra.mxu0 %v756
        %788 = vmatprep.subr.bf16.mxu0 0
        %789 = vmatpush2.bf16.msra.mxu0 0
        %790 = vmatprep.subr.bf16.mxu0 0
        %791 = vmatpush2.bf16.msra.mxu0 0
        %792 = vmatprep.subr.bf16.mxu0 0
        %793 = vmatpush2.bf16.msra.mxu0 0
        %794 = vmatprep.subr.bf16.mxu0 0
        %795 = vmatpush2.bf16.msra.mxu0 0
        %796 = vmatprep.subr.bf16.mxu0 0
        %797 = vmatpush2.bf16.msra.mxu0 0
        %798 = vmatprep.subr.bf16.mxu0 0
        %799 = vmatpush2.bf16.msra.mxu0 0
        %800 = vmatprep.subr.bf16.mxu0 0
        %801 = vmatpush2.bf16.msra.mxu0 0
        %802 = vmatprep.subr.bf16.mxu0 0
        %803 = vmatpush2.bf16.msra.mxu0 0
        %804 = vmatprep.mubr.bf16.mxu0 0
        %805 = vmatmul.mubr.bf16.gmra.mxu0 %v707
        %v806 = vpop.f32.mrf.mxu0
        %v807 = vadd.f32 0.0, %v806
        %v808 = vpop.f32.mrf.mxu0
        %v809 = vpop.f32.mrf.mxu0
        %v810 = vadd.f32 0.0, %v809
        %v811 = vpop.f32.mrf.mxu0
        %812 = vdwg.mxu0
        %v813 = vtanh.pop %v807
        %v814 = vtanh.pop %v810
        %v815 = vrot.slane %v813, 1
        %v816 = vrot.slane %v814, 1
        %v817 = vsel %vm325, %v815, %v816
        %v818 = vsel %vm305, %v817, 0.0
        %v819 = vadd.f32 %v813, %v818
        %v820 = vmul.f32 %v819, 0.5
        %821 = vst.msk [vmem:[%s297] sm:$0xff] %vm310, %v820
        %s822 = sand.u32 %s142, 1
        %s823 = scalar_lea.sflag [#allocation4], %s822
        %s824 = sand.u32 %s142, 1
        %s825 = smul.addr %s824, 8
        %s826 = scalar_lea.vmem [#allocation11], %s825
        // Predicated region
        $region61: #{conv_autoencoder_forward.1} parent=39 // pred_check
          %p827 = pneg %p152
        $region62: #{conv_autoencoder_forward.1} parent=39 // pred_check_branch
          %829 = sbr.rel (%p827) target = $region64
        $region63: #{conv_autoencoder_forward.1} parent=39 // pred_region
          %s831 = ssub.s32 128, 128
          %832 = vsyncadd %s823, %s831
          %s833 = smul.addr %s24, 128
          %s834 = scalar_lea.hbm %s5, %s833
          %s836 = sshll.u32 %s826, 4
          %s837 = int_to_ptr.vmem [resolvable:$true] %s836
          %839 = dma.vmem_to_hbm [thread:$0]  %s837, 128, %s834, %s823
        $region64: #{conv_autoencoder_forward.1} parent=39 // pred_fallthru
          _
      $region40: #{conv_autoencoder_forward.1} parent=5 // pred_fallthru
        _
      %p840 = scmp.le.s32.totalorder 2, %s19
      // Predicated region
      $region65: #{conv_autoencoder_forward.1} parent=5 // pred_check
        %p841 = pneg %p840
      $region66: #{conv_autoencoder_forward.1} parent=5 // pred_check_branch
        %843 = sbr.rel (%p841) target = $region68
      $region67: #{conv_autoencoder_forward.1} parent=5 // pred_region
        %s844 = ssub.s32 %s19, 2
        // Predicated region
        $region69: #{conv_autoencoder_forward.1} parent=67 // pred_check
          %p845 = pneg %p158
        $region70: #{conv_autoencoder_forward.1} parent=67 // pred_check_branch
          %847 = sbr.rel (%p845) target = $region72
        $region71: #{conv_autoencoder_forward.1} parent=67 // pred_region
          %s848 = sand.u32 %s143, 1
          %s849 = scalar_lea.sflag [#allocation4], %s848
          %s850 = sand.u32 %s143, 1
          %s851 = smul.addr %s850, 8
          %s852 = scalar_lea.vmem [#allocation11], %s851
          %853 = dma.done %s849, 128
        $region72: #{conv_autoencoder_forward.1} parent=67 // pred_fallthru
          _
      $region68: #{conv_autoencoder_forward.1} parent=5 // pred_fallthru
        _
    $region6: #{conv_autoencoder_forward.1} parent=1 // loop_footer
      %s23 = sadd.s32 1, %s19
    $region7: #{conv_autoencoder_forward.1} parent=1 // loop_footer_branch
      %18 = sbr.rel target = $region3
    $region8: #{conv_autoencoder_forward.1} parent=1 // loop_exit
      _
    %854 = vsyncpa [#allocation3], 1
    %s855 = scalar_lea.sflag [#allocation3], 1
    %856 = vsyncpa %s855, 1
    %857 = vsyncpa [#allocation6], 1
    %858 = vsyncpa [#allocation9], 1
    %859 = vsyncpa [#allocation4], 1
    %s860 = scalar_lea.sflag [#allocation4], 1
    %861 = vsyncpa %s860, 1

</llo_original>
